<compile_context>
chip_gen: v6e
topology: v6e:2x2x1
jax: 0.10.0
libtpu: 0.0.40
codegen_flags: <defaults>
</compile_context>

<pallas_src>
import functools
import numpy as np
import jax
import jax.numpy as jnp
from jax.experimental import pallas as pl
from jax.experimental.pallas import tpu as pltpu

LANE = 128


def rank_kernel(pT_ref, biasT_ref, w1pT_ref, w2T_ref, out_ref):
    """Fused hot path for one (couple-tile, batch) grid step, transposed layout
    (couple index on the lane axis):

        h^T  = relu(W1p^T @ P^T + bias_eff^T)      (F, TILE_N)
        out  = w2^T @ h^T                          (1, TILE_N)   lane-dense

    bias_eff = (kmat @ rel_pos_emb) @ W1e + b1 is batch-invariant, precomputed in
    the wrapper and DMA'd once per couple tile (constant index along the inner
    batch grid axis).  b2 is added in the wrapper.
    """
    h = jnp.dot(w1pT_ref[...], pT_ref[...], preferred_element_type=jnp.float32)
    h = jnp.maximum(h + biasT_ref[...], 0.0)
    out_ref[...] = jnp.dot(w2T_ref[...], h, preferred_element_type=jnp.float32)


def _couples(seq_len, K):
    ii, jj = np.meshgrid(np.arange(seq_len), np.arange(seq_len), indexing="ij")
    emo_pos = (ii + 1).reshape(-1)
    cau_pos = (jj + 1).reshape(-1)
    rel_pos = cau_pos - emo_pos
    if seq_len > K + 1:
        keep = np.abs(rel_pos) <= K
        emo_pos, cau_pos, rel_pos = emo_pos[keep], cau_pos[keep], rel_pos[keep]
    return emo_pos, cau_pos, rel_pos


def _round_up(x, m):
    return -(-x // m) * m


@functools.lru_cache(maxsize=None)
def _build_rank_forward(seq_len, K, feat_dim, pos_emb_dim):
    """Builds (jitted forward, emo_cau_pos) for a given static problem shape.

    Everything that only depends on (seq_len, K) — couple tables, kernel matrix —
    is computed here once (host-side numpy) and baked into the jitted function.
    """
    emo_pos, cau_pos, rel_pos = _couples(seq_len, K)
    N = int(rel_pos.shape[0])
    rel_shift = rel_pos + K                      # values in [0, 2K]
    d = rel_shift.astype(np.float32)
    kmat = np.exp(-((d[:, None] - d[None, :]) ** 2)).astype(np.float32)

    rank_feat_dim = 2 * feat_dim + pos_emb_dim   # F

    # ---- lane-dense padding / tiling of the couple axis ----
    N_128 = _round_up(N, LANE)
    # per-lane (column) bytes across all tiled operands: P col + bias col + out col
    col_bytes = (2 * feat_dim + rank_feat_dim + 1) * 4
    budget = 8 << 20                              # per-step working-set target (fits v7x)
    cap = max(LANE, (budget // (2 * col_bytes)) // LANE * LANE)
    TILE_N = int(min(N_128, cap, 2048))           # multiple of 128
    N_pad = _round_up(N, TILE_N)
    n_tiles = N_pad // TILE_N

    # VMEM limit: double-buffered tiles + resident weights, generous clamp.
    need = 2 * ((2 * feat_dim + rank_feat_dim + 1) * TILE_N
                + rank_feat_dim * (2 * feat_dim + 1)) * 4
    vmem_limit = int(min(max(4 * need, 16 << 20), 32 << 20))

    emo_idx = jnp.asarray(emo_pos - 1, dtype=jnp.int32)
    cau_idx = jnp.asarray(cau_pos - 1, dtype=jnp.int32)
    rel_idx = jnp.asarray(rel_shift, dtype=jnp.int32)
    kmat_j = jnp.asarray(kmat)

    @jax.jit
    def fwd(doc_sents_h, pos_emb, w1, b1, w2, b2):
        batch = doc_sents_h.shape[0]

        # ---- batch-invariant precompute (hoisted out of the kernel) ----
        emb = pos_emb[rel_idx]                               # (N, E)
        bias_eff = (kmat_j @ emb) @ w1[2 * feat_dim:] + b1   # (N, F)
        biasT = jnp.pad(bias_eff.T, ((0, 0), (0, N_pad - N)))          # (F, N_pad)

        # ---- couples, built already transposed (couple index on lane axis) ----
        # TODO(synk): for large seq_len this gather could move into the kernel
        # (memory_space=pl.ANY + scalar-prefetched couple indices); at these sizes
        # the wrapper-side gather under the same jit is cheaper.
        Ht = jnp.transpose(doc_sents_h, (0, 2, 1))           # (B, D, S)
        P_T = jnp.concatenate([Ht[:, :, emo_idx], Ht[:, :, cau_idx]], axis=1)
        P_T = jnp.pad(P_T, ((0, 0), (0, 0), (0, N_pad - N)))           # (B, 2D, N_pad)

        w1pT = w1[: 2 * feat_dim].T                          # (F, 2D)  resident
        w2T = w2.T                                           # (1, F)   resident

        out = pl.pallas_call(
            rank_kernel,
            out_shape=jax.ShapeDtypeStruct((batch, 1, N_pad), jnp.float32),
            grid=(n_tiles, batch),                           # batch innermost
            in_specs=[
                # P tile: changes every step
                pl.BlockSpec((None, 2 * feat_dim, TILE_N), lambda m, b: (b, 0, m)),
                # bias tile: constant along the inner batch axis -> DMA'd once per m
                pl.BlockSpec((rank_feat_dim, TILE_N), lambda m, b: (0, m)),
                # resident weights
                pl.BlockSpec((rank_feat_dim, 2 * feat_dim), lambda m, b: (0, 0)),
                pl.BlockSpec((1, rank_feat_dim), lambda m, b: (0, 0)),
            ],
            out_specs=pl.BlockSpec((None, 1, TILE_N), lambda m, b: (b, 0, m)),
            compiler_params=pltpu.CompilerParams(
                dimension_semantics=("parallel", "parallel"),
                vmem_limit_bytes=vmem_limit),
        )(P_T, biasT, w1pT, w2T)

        # scalar bias + lane-padding slice fused in the jitted wrapper
        return out.reshape(batch, N_pad)[:, :N] + b2[0]

    # TODO(synk): emo_cau_pos is a host-side Python list in the reference; kept on host.
    emo_cau_pos = [[int(e), int(c)] for e, c in zip(emo_pos, cau_pos)]
    return fwd, emo_cau_pos


def rank_forward(doc_sents_h, params, K):
    batch, seq_len, feat_dim = doc_sents_h.shape
    pos_emb_dim = params["pos_emb"].shape[1]
    fwd, emo_cau_pos = _build_rank_forward(int(seq_len), int(K),
                                           int(feat_dim), int(pos_emb_dim))
    pred = fwd(doc_sents_h, params["pos_emb"], params["w1"], params["b1"],
               params["w2"], params["b2"])
    return pred, emo_cau_pos


def rank_forward_ref(doc_sents_h, params, K):
    """Pure-JAX reference of the same forward (for correctness check)."""
    batch, seq_len, feat_dim = doc_sents_h.shape
    pos_w, w1, b1, w2, b2 = (params["pos_emb"], params["w1"], params["b1"],
                             params["w2"], params["b2"])
    emo_pos, cau_pos, rel_pos = _couples(seq_len, K)
    rel_shift = rel_pos + K
    d = rel_shift.astype(np.float32)
    kmat = jnp.asarray(np.exp(-((d[:, None] - d[None, :]) ** 2)).astype(np.float32))
    P = jnp.concatenate([doc_sents_h[:, emo_pos - 1, :],
                         doc_sents_h[:, cau_pos - 1, :]], axis=2)
    emb = pos_w[jnp.asarray(rel_shift)]
    pos = kmat @ emb
    feats = jnp.concatenate(
        [P, jnp.broadcast_to(pos[None], (batch,) + pos.shape)], axis=2)
    h = jax.nn.relu(feats @ w1 + b1)
    return (h @ w2 + b2)[..., 0]


def init_params(key, K, feat_dim, pos_emb_dim):
    rank_feat_dim = 2 * feat_dim + pos_emb_dim
    k1, k2, k3, k4, k5 = jax.random.split(key, 5)
    n_emb = 2 * K + 1
    # xavier_uniform_ for the embedding weight
    limit = float(np.sqrt(6.0 / (n_emb + pos_emb_dim)))
    pos_emb = jax.random.uniform(k1, (n_emb, pos_emb_dim), jnp.float32, -limit, limit)
    # Linear layers (stored as (in_features, out_features)), torch-like uniform init
    lim1 = float(np.sqrt(1.0 / rank_feat_dim))
    w1 = jax.random.uniform(k2, (rank_feat_dim, rank_feat_dim), jnp.float32, -lim1, lim1)
    b1 = jax.random.uniform(k3, (rank_feat_dim,), jnp.float32, -lim1, lim1)
    w2 = jax.random.uniform(k4, (rank_feat_dim, 1), jnp.float32, -lim1, lim1)
    b2 = jax.random.uniform(k5, (1,), jnp.float32, -lim1, lim1)
    return {"pos_emb": pos_emb, "w1": w1, "b1": b1, "w2": w2, "b2": b2}


if __name__ == "__main__":
    K = 3                 # configs.rank_K
    feat_dim = 16         # configs.feat_dim
    pos_emb_dim = 32      # configs.rank_pos_emb_dim
    batch, seq_len = 2, 8

    key = jax.random.PRNGKey(0)
    kp, kx = jax.random.split(key)
    params = init_params(kp, K, feat_dim, pos_emb_dim)
    x = jax.random.normal(kx, (batch, seq_len, feat_dim), jnp.float32)

    pred, emo_cau_pos = rank_forward(x, params, K)
    pred = jax.block_until_ready(pred)

    ref = jax.block_until_ready(rank_forward_ref(x, params, K))
    np.testing.assert_allclose(np.asarray(pred), np.asarray(ref),
                               rtol=1e-4, atol=1e-4)
    assert pred.shape == (batch, len(emo_cau_pos))
    print("KERNEL_OK")
</pallas_src>

<mosaic_0001>
module attributes {stable_mosaic.version = 11 : i64} {
  func.func @rank_kernel(%arg0: i32, %arg1: i32, %arg2: memref<1x32x128xf32, #tpu.memory_space<vmem>>, %arg3: memref<64x128xf32, #tpu.memory_space<vmem>>, %arg4: memref<64x32xf32, #tpu.memory_space<vmem>>, %arg5: memref<1x64xf32, #tpu.memory_space<vmem>>, %arg6: memref<1x1x128xf32, #tpu.memory_space<vmem>>) attributes {dimension_semantics = [#tpu.dimension_semantics<parallel>, #tpu.dimension_semantics<parallel>], iteration_bounds = array<i64: 1, 2>, scalar_prefetch = 0 : i64, scratch_operands = 0 : i64, tpu.core_type = #tpu.core_type<tc>, window_params = [{transform_indices = @transform_0, window_bounds = array<i64: 1, 32, 128>}, {transform_indices = @transform_1, window_bounds = array<i64: 64, 128>}, {pipeline_mode = #tpu.pipeline_mode<synchronous>, transform_indices = @transform_2, window_bounds = array<i64: 64, 32>}, {pipeline_mode = #tpu.pipeline_mode<synchronous>, transform_indices = @transform_3, window_bounds = array<i64: 1, 64>}, {transform_indices = @transform_4, window_bounds = array<i64: 1, 1, 128>}]} {
    %c0 = arith.constant 0 : index
    %c0_0 = arith.constant 0 : index
    %0 = vector.load %arg4[%c0, %c0_0] : memref<64x32xf32, #tpu.memory_space<vmem>>, vector<64x32xf32>
    %c0_1 = arith.constant 0 : index
    %c0_2 = arith.constant 0 : index
    %c0_3 = arith.constant 0 : index
    %1 = vector.load %arg2[%c0_1, %c0_2, %c0_3] : memref<1x32x128xf32, #tpu.memory_space<vmem>>, vector<1x32x128xf32>
    %2 = vector.shape_cast %1 : vector<1x32x128xf32> to vector<32x128xf32>
    %cst = arith.constant dense<0.000000e+00> : vector<64x128xf32>
    %3 = tpu.matmul %0, %2, %cst {dimension_numbers = #tpu.dot_dimension_numbers<[1], [0], [0], [1], [0, 0, 1, 1], [], []>} : vector<64x32xf32>, vector<32x128xf32>, vector<64x128xf32> -> vector<64x128xf32>
    %c0_4 = arith.constant 0 : index
    %c0_5 = arith.constant 0 : index
    %4 = vector.load %arg3[%c0_4, %c0_5] : memref<64x128xf32, #tpu.memory_space<vmem>>, vector<64x128xf32>
    %5 = arith.addf %3, %4 : vector<64x128xf32>
    %cst_6 = arith.constant 0.000000e+00 : f32
    %6 = vector.broadcast %cst_6 : f32 to vector<64x128xf32>
    %7 = arith.maximumf %5, %6 : vector<64x128xf32>
    %c0_7 = arith.constant 0 : index
    %c0_8 = arith.constant 0 : index
    %8 = vector.load %arg5[%c0_7, %c0_8] : memref<1x64xf32, #tpu.memory_space<vmem>>, vector<1x64xf32>
    %cst_9 = arith.constant dense<0.000000e+00> : vector<1x128xf32>
    %9 = tpu.matmul %8, %7, %cst_9 {dimension_numbers = #tpu.dot_dimension_numbers<[1], [0], [0], [1], [0, 0, 1, 1], [], []>} : vector<1x64xf32>, vector<64x128xf32>, vector<1x128xf32> -> vector<1x128xf32>
    %c0_10 = arith.constant 0 : index
    %c0_11 = arith.constant 0 : index
    %c0_12 = arith.constant 0 : index
    %10 = vector.load %arg6[%c0_10, %c0_11, %c0_12] : memref<1x1x128xf32, #tpu.memory_space<vmem>>, vector<1x1x128xf32>
    %11 = vector.shape_cast %10 : vector<1x1x128xf32> to vector<1x128xf32>
    %12 = vector.shape_cast %9 : vector<1x128xf32> to vector<1x1x128xf32>
    tpu.vector_store %arg6[%c0_10, %c0_11, %c0_12], %12 {strides = array<i32>} : memref<1x1x128xf32, #tpu.memory_space<vmem>>, vector<1x1x128xf32>,
    return
  }
  func.func @transform_0(%arg0: i32, %arg1: i32) -> (i32, i32, i32) {
    %c0_i32 = arith.constant 0 : i32
    %c0_i32_0 = arith.constant 0 : i32
    return %arg1, %c0_i32, %arg0 : i32, i32, i32
  }
  func.func @transform_1(%arg0: i32, %arg1: i32) -> (i32, i32) {
    %c0_i32 = arith.constant 0 : i32
    %c0_i32_0 = arith.constant 0 : i32
    return %c0_i32, %arg0 : i32, i32
  }
  func.func @transform_2(%arg0: i32, %arg1: i32) -> (i32, i32) {
    %c0_i32 = arith.constant 0 : i32
    %c0_i32_0 = arith.constant 0 : i32
    %c0_i32_1 = arith.constant 0 : i32
    return %c0_i32, %c0_i32_0 : i32, i32
  }
  func.func @transform_3(%arg0: i32, %arg1: i32) -> (i32, i32) {
    %c0_i32 = arith.constant 0 : i32
    %c0_i32_0 = arith.constant 0 : i32
    %c0_i32_1 = arith.constant 0 : i32
    return %c0_i32, %c0_i32_0 : i32, i32
  }
  func.func @transform_4(%arg0: i32, %arg1: i32) -> (i32, i32, i32) {
    %c0_i32 = arith.constant 0 : i32
    %c0_i32_0 = arith.constant 0 : i32
    return %arg1, %c0_i32, %arg0 : i32, i32, i32
  }
}

</mosaic_0001>

<llo_original>
// kernel: fwd.1
$region0: #{fwd.1}
  #allocation0 [shape = 'u32[]', space=smem, size = 0x4, offset = 0x4, fixed_abs, tag = 'smem constant byte address 0x4 - core index']
  #allocation1 [shape = 'u32[144,128]{1,0:T(1,128)}', space=vmem, size = 0x12000, scoped, tag = 'internal scratch']
  %s0 = inlined_call_operand.vmem [shape: f32[2,32,128], index: 0, kind: input, shape index: {}]
  %s1 = inlined_call_operand.vmem [shape: f32[64,128], index: 1, kind: input, shape index: {}]
  %s2 = inlined_call_operand.vmem [shape: f32[64,32], index: 2, kind: input, shape index: {}]
  %s3 = inlined_call_operand.vmem [shape: f32[1,64], index: 3, kind: input, shape index: {}]
  %s4 = inlined_call_operand.vmem [shape: f32[2,1,128], index: 4, kind: output, shape index: {}]
  %s5 = sld [smem:[#allocation0]]
  $region49: #{fwd.1} parent=0
    _
  %s7 = ssub.s32 1, %s5
  %s8 = scalar_select 0, %s7, %s5
  loop: start=0, step=1, limit=4
  $region2: #{fwd.1} parent=0 // loop_pre_header
    _
  $region3: #{fwd.1} parent=0 // loop_header
    %s10 = sphi 0, %s14
    %p11 = scmp.ge.s32.totalorder %s10, 4
    %s17 = sphi 0, %s29
    %s18 = sphi 0, %s25
    %s19 = sphi 0, %s17
    %s20 = sphi 0, %s18
    %s21 = sphi 0, %s19
    %s22 = sphi 0, %s20
    %s34 = sphi 0, %s36
    %s37 = sphi 0, %s34
    %s38 = sphi 0, %s37
    %s54 = sphi 0, %s38
    %s60 = sphi 0, %s62
    %s63 = sphi 0, %s60
    %s64 = sphi 0, %s63
    %s80 = sphi 0, %s64
    %s84 = sphi 0, %s84
    %s86 = sphi 0, %s84
    %s87 = sphi 0, %s86
    %s101 = sphi 0, %s87
    %s105 = sphi 0, %s105
    %s107 = sphi 0, %s105
    %s108 = sphi 0, %s107
    %s122 = sphi 0, %s108
    %s130 = sphi 0, %s132
    %s133 = sphi 0, %s130
    %s134 = sphi 0, %s133
    %s150 = sphi 0, %s134
  $region4: #{fwd.1} parent=0 // loop_header_branch
    %13 = sbr.rel (%p11) target = $region8
  $region5: #{fwd.1} parent=0 // loop_body
    %s15 = ssub.s32 %s10, 1
    %s16 = ssub.s32 %s10, 2
    %s23 = sadd.s32 1, %s18
    %p24 = scmp.ge.s32.totalorder %s23, 2
    %s25 = scalar_select %p24, 0, %s23
    %s26 = sadd.s32 1, %s17
    %s27 = scalar_select %p24, %s26, %s17
    %p28 = scmp.ge.s32.totalorder %s27, 1
    %s29 = scalar_select %p28, 0, %s27
    %s30 = ssub.s32 %s18, %s25
    %s31 = ssub.s32 %s17, %s29
    %s32 = sor.u32 %s30, %s31
    %p33 = scmp.eq.s32.totalorder %s32, 0
    %s35 = sadd.s32 %s34, 1
    %s36 = scalar_select %p33, %s34, %s35
    %p39 = pneg %p33
    %p40 = scmp.eq.s32.totalorder %s10, 1
    %p41 = por %p39, %p40
    %p42 = scmp.ne.s32.totalorder %s34, %s37
    %p43 = scmp.eq.s32.totalorder %s10, 0
    %p44 = por %p42, %p43
    %p45 = scmp.ne.s32.totalorder %s34, %s37
    %p46 = scmp.eq.s32.totalorder %s15, 1
    %p47 = por %p45, %p46
    %p48 = scmp.ne.s32.totalorder %s37, %s38
    %p49 = scmp.eq.s32.totalorder %s15, 0
    %p50 = por %p48, %p49
    %p51 = scmp.ne.s32.totalorder %s37, %s38
    %p52 = scmp.eq.s32.totalorder %s16, 1
    %p53 = por %p51, %p52
    %p55 = scmp.ne.s32.totalorder %s38, %s54
    %p56 = scmp.eq.s32.totalorder %s16, 0
    %p57 = por %p55, %p56
    %s58 = ssub.s32 %s17, %s29
    %p59 = scmp.eq.s32.totalorder %s58, 0
    %s61 = sadd.s32 %s60, 1
    %s62 = scalar_select %p59, %s60, %s61
    %p65 = pneg %p59
    %p66 = scmp.eq.s32.totalorder %s10, 1
    %p67 = por %p65, %p66
    %p68 = scmp.ne.s32.totalorder %s60, %s63
    %p69 = scmp.eq.s32.totalorder %s10, 0
    %p70 = por %p68, %p69
    %p71 = scmp.ne.s32.totalorder %s60, %s63
    %p72 = scmp.eq.s32.totalorder %s15, 1
    %p73 = por %p71, %p72
    %p74 = scmp.ne.s32.totalorder %s63, %s64
    %p75 = scmp.eq.s32.totalorder %s15, 0
    %p76 = por %p74, %p75
    %p77 = scmp.ne.s32.totalorder %s63, %s64
    %p78 = scmp.eq.s32.totalorder %s16, 1
    %p79 = por %p77, %p78
    %p81 = scmp.ne.s32.totalorder %s64, %s80
    %p82 = scmp.eq.s32.totalorder %s16, 0
    %p83 = por %p81, %p82
    %s85 = sadd.s32 %s84, 1
    %p88 = scmp.eq.s32.totalorder %s10, 1
    %p89 = scmp.ne.s32.totalorder %s84, %s86
    %p90 = scmp.eq.s32.totalorder %s10, 0
    %p91 = por %p89, %p90
    %p92 = scmp.ne.s32.totalorder %s84, %s86
    %p93 = scmp.eq.s32.totalorder %s15, 1
    %p94 = por %p92, %p93
    %p95 = scmp.ne.s32.totalorder %s86, %s87
    %p96 = scmp.eq.s32.totalorder %s15, 0
    %p97 = por %p95, %p96
    %p98 = scmp.ne.s32.totalorder %s86, %s87
    %p99 = scmp.eq.s32.totalorder %s16, 1
    %p100 = por %p98, %p99
    %p102 = scmp.ne.s32.totalorder %s87, %s101
    %p103 = scmp.eq.s32.totalorder %s16, 0
    %p104 = por %p102, %p103
    %s106 = sadd.s32 %s105, 1
    %p109 = scmp.eq.s32.totalorder %s10, 1
    %p110 = scmp.ne.s32.totalorder %s105, %s107
    %p111 = scmp.eq.s32.totalorder %s10, 0
    %p112 = por %p110, %p111
    %p113 = scmp.ne.s32.totalorder %s105, %s107
    %p114 = scmp.eq.s32.totalorder %s15, 1
    %p115 = por %p113, %p114
    %p116 = scmp.ne.s32.totalorder %s107, %s108
    %p117 = scmp.eq.s32.totalorder %s15, 0
    %p118 = por %p116, %p117
    %p119 = scmp.ne.s32.totalorder %s107, %s108
    %p120 = scmp.eq.s32.totalorder %s16, 1
    %p121 = por %p119, %p120
    %p123 = scmp.ne.s32.totalorder %s108, %s122
    %p124 = scmp.eq.s32.totalorder %s16, 0
    %p125 = por %p123, %p124
    %s126 = ssub.s32 %s18, %s25
    %s127 = ssub.s32 %s17, %s29
    %s128 = sor.u32 %s126, %s127
    %p129 = scmp.eq.s32.totalorder %s128, 0
    %s131 = sadd.s32 %s130, 1
    %s132 = scalar_select %p129, %s130, %s131
    %p135 = pneg %p129
    %p136 = scmp.eq.s32.totalorder %s10, 1
    %p137 = por %p135, %p136
    %p138 = scmp.ne.s32.totalorder %s130, %s133
    %p139 = scmp.eq.s32.totalorder %s10, 0
    %p140 = por %p138, %p139
    %p141 = scmp.ne.s32.totalorder %s130, %s133
    %p142 = scmp.eq.s32.totalorder %s15, 1
    %p143 = por %p141, %p142
    %p144 = scmp.ne.s32.totalorder %s133, %s134
    %p145 = scmp.eq.s32.totalorder %s15, 0
    %p146 = por %p144, %p145
    %p147 = scmp.ne.s32.totalorder %s133, %s134
    %p148 = scmp.eq.s32.totalorder %s16, 1
    %p149 = por %p147, %p148
    %p151 = scmp.ne.s32.totalorder %s134, %s150
    %p152 = scmp.eq.s32.totalorder %s16, 0
    %p153 = por %p151, %p152
    %p154 = scmp.le.s32.totalorder 1, %s10
    %p155 = scmp.lt.s32.totalorder %s10, 3
    %p156 = pnand %p154, %p155
    %p157 = pneg %p156
    // Predicated region
    $region9: #{fwd.1} parent=5 // pred_check
      _
    $region10: #{fwd.1} parent=5 // pred_check_branch
      %159 = sbr.rel (%p156) target = $region12
    $region11: #{fwd.1} parent=5 // pred_region
      %s160 = ssub.s32 %s10, 1
      // Predicated region
      $region13: #{fwd.1} parent=11 // pred_check
        %p161 = pneg %p76
      $region14: #{fwd.1} parent=11 // pred_check_branch
        %163 = sbr.rel (%p161) target = $region16
      $region15: #{fwd.1} parent=11 // pred_region
        %p164 = scmp.lt.s32.totalorder %s19, 0
        %s165 = scalar_select %p164, %s19, 0
        %s166 = smul.addr %s165, 8
        %s167 = scalar_lea.vmem %s1, %s166
      $region16: #{fwd.1} parent=11 // pred_fallthru
        _
      // Predicated region
      $region17: #{fwd.1} parent=11 // pred_check
        %p168 = pneg %p97
      $region18: #{fwd.1} parent=11 // pred_check_branch
        %170 = sbr.rel (%p168) target = $region20
      $region19: #{fwd.1} parent=11 // pred_region
        _
      $region20: #{fwd.1} parent=11 // pred_fallthru
        _
      // Predicated region
      $region21: #{fwd.1} parent=11 // pred_check
        %p171 = pneg %p118
      $region22: #{fwd.1} parent=11 // pred_check_branch
        %173 = sbr.rel (%p171) target = $region24
      $region23: #{fwd.1} parent=11 // pred_region
        _
      $region24: #{fwd.1} parent=11 // pred_fallthru
        _
    $region12: #{fwd.1} parent=5 // pred_fallthru
      _
    %p174 = scmp.lt.s32.totalorder %s10, 2
    // Predicated region
    $region25: #{fwd.1} parent=5 // pred_check
      %p175 = pneg %p174
    $region26: #{fwd.1} parent=5 // pred_check_branch
      %177 = sbr.rel (%p175) target = $region28
    $region27: #{fwd.1} parent=5 // pred_region
      // Predicated region
      $region29: #{fwd.1} parent=27 // pred_check
        %p178 = pneg %p44
      $region30: #{fwd.1} parent=27 // pred_check_branch
        %180 = sbr.rel (%p178) target = $region32
      $region31: #{fwd.1} parent=27 // pred_region
        %p181 = scmp.lt.s32.totalorder %s18, 1
        %s182 = scalar_select %p181, %s18, 1
        %p183 = scmp.lt.s32.totalorder %s17, 0
        %s184 = scalar_select %p183, %s17, 0
        %s185 = smul.addr %s182, 4
        %s186 = sadd.s32 %s184, %s185
        %s187 = smul.addr %s186, 8
        %s188 = scalar_lea.vmem %s0, %s187
      $region32: #{fwd.1} parent=27 // pred_fallthru
        _
    $region28: #{fwd.1} parent=5 // pred_fallthru
      _
    %p189 = scmp.le.s32.totalorder 1, %s10
    %p190 = scmp.lt.s32.totalorder %s10, 3
    %p191 = pnand %p189, %p190
    %p192 = pneg %p191
    // Predicated region
    $region33: #{fwd.1} parent=5 // pred_check
      _
    $region34: #{fwd.1} parent=5 // pred_check_branch
      %194 = sbr.rel (%p191) target = $region36
    $region35: #{fwd.1} parent=5 // pred_region
      %s195 = ssub.s32 %s10, 1
      %p196 = scmp.lt.s32.totalorder %s20, 1
      %s197 = scalar_select %p196, %s20, 1
      %p198 = scmp.lt.s32.totalorder %s19, 0
      %s199 = scalar_select %p198, %s19, 0
      %s200 = smul.addr %s197, 4
      %s201 = sadd.s32 %s199, %s200
      %s202 = smul.addr %s201, 8
      %s203 = scalar_lea.vmem %s0, %s202
      %p204 = pneg %p50
      %p205 = pneg %p47
      %p206 = scmp.lt.s32.totalorder %s19, 0
      %s207 = scalar_select %p206, %s19, 0
      %s208 = smul.addr %s207, 8
      %s209 = scalar_lea.vmem %s1, %s208
      %p210 = pneg %p76
      %p211 = pneg %p73
      %p212 = pneg %p97
      %p213 = pneg %p94
      %p214 = pneg %p118
      %p215 = pneg %p115
      %p216 = pneg %p146
      %p217 = pneg %p143
      %p218 = scmp.lt.s32.totalorder %s20, 1
      %s219 = scalar_select %p218, %s20, 1
      %p220 = scmp.lt.s32.totalorder %s19, 0
      %s221 = scalar_select %p220, %s19, 0
      %s222 = sadd.s32 %s221, %s219
      %s223 = scalar_lea.vmem %s4, %s222
      %p224 = scmp.lt.s32.totalorder %s20, 1
      %s225 = scalar_select %p224, %s20, 1
      %p226 = scmp.lt.s32.totalorder %s19, 0
      %s227 = scalar_select %p226, %s19, 0
      %s228 = smul.addr %s225, 4
      %s229 = sadd.s32 %s227, %s228
      %s230 = smul.addr %s229, 8
      %s231 = scalar_lea.vmem %s0, %s230
      %p232 = scmp.lt.s32.totalorder %s19, 0
      %s233 = scalar_select %p232, %s19, 0
      %s234 = smul.addr %s233, 8
      %s235 = scalar_lea.vmem %s1, %s234
      %p236 = scmp.lt.s32.totalorder %s20, 1
      %s237 = scalar_select %p236, %s20, 1
      %p238 = scmp.lt.s32.totalorder %s19, 0
      %s239 = scalar_select %p238, %s19, 0
      %s240 = sadd.s32 %s239, %s237
      %s241 = scalar_lea.vmem %s4, %s240
      %v242 = vld [vmem:[%s2] sm:$0xff]
      %v243 = vld [vmem:[%s2 + $0x8] sm:$0xff]
      %v244 = vld [vmem:[%s2 + $0x10] sm:$0xff]
      %v245 = vld [vmem:[%s2 + $0x18] sm:$0xff]
      %v246 = vld [vmem:[%s2 + $0x20] sm:$0xff]
      %v247 = vld [vmem:[%s2 + $0x28] sm:$0xff]
      %v248 = vld [vmem:[%s2 + $0x30] sm:$0xff]
      %v249 = vld [vmem:[%s2 + $0x38] sm:$0xff]
      %v250 = vld [vmem:[%s231] sm:$0xff]
      %v251 = vld [vmem:[%s231 + $0x8] sm:$0xff]
      %v252 = vld [vmem:[%s231 + $0x10] sm:$0xff]
      %v253 = vld [vmem:[%s231 + $0x18] sm:$0xff]
      %v254 = vld [vmem:[%s235] sm:$0xff]
      %v255 = vld [vmem:[%s235 + $0x8] sm:$0xff]
      %v256 = vld [vmem:[%s235 + $0x10] sm:$0xff]
      %v257 = vld [vmem:[%s235 + $0x18] sm:$0xff]
      %v258 = vld [vmem:[%s235 + $0x20] sm:$0xff]
      %v259 = vld [vmem:[%s235 + $0x28] sm:$0xff]
      %v260 = vld [vmem:[%s235 + $0x30] sm:$0xff]
      %v261 = vld [vmem:[%s235 + $0x38] sm:$0xff]
      %vm262 = vcmask 261120
      %v264 = vsel %vm262, %v242, 0
      %v267 = vsel %vm262, %v243, 0
      %v270 = vsel %vm262, %v244, 0
      %v273 = vsel %vm262, %v245, 0
      %v276 = vsel %vm262, %v246, 0
      %v279 = vsel %vm262, %v247, 0
      %v282 = vsel %vm262, %v248, 0
      %v285 = vsel %vm262, %v249, 0
      %287 = vmatprep.subr.mxu0 0.0
      %288 = vmatpush1.msra.mxu0 0.0
      %289 = vmatprep.subr.mxu0 0.0
      %290 = vmatpush1.msra.mxu0 0.0
      %291 = vmatprep.subr.mxu0 0.0
      %292 = vmatpush1.msra.mxu0 0.0
      %293 = vmatprep.subr.mxu0 0.0
      %294 = vmatpush1.msra.mxu0 0.0
      %295 = vmatprep.subr.mxu0 0.0
      %296 = vmatpush1.msra.mxu0 0.0
      %297 = vmatprep.subr.mxu0 0.0
      %298 = vmatpush1.msra.mxu0 0.0
      %299 = vmatprep.subr.mxu0 0.0
      %300 = vmatpush1.msra.mxu0 0.0
      %301 = vmatprep.subr.mxu0 0.0
      %302 = vmatpush1.msra.mxu0 0.0
      %303 = vmatprep.subr.mxu0 0.0
      %304 = vmatpush1.msra.mxu0 0.0
      %305 = vmatprep.subr.mxu0 0.0
      %306 = vmatpush1.msra.mxu0 0.0
      %307 = vmatprep.subr.mxu0 0.0
      %308 = vmatpush1.msra.mxu0 0.0
      %309 = vmatprep.subr.mxu0 0.0
      %310 = vmatpush1.msra.mxu0 0.0
      %311 = vmatprep.subr.mxu0 0.0
      %312 = vmatpush1.msra.mxu0 %v253
      %313 = vmatprep.subr.mxu0 0.0
      %314 = vmatpush1.msra.mxu0 %v252
      %315 = vmatprep.subr.mxu0 0.0
      %316 = vmatpush1.msra.mxu0 %v251
      %317 = vmatprep.subr.mxu0 0.0
      %318 = vmatpush1.msra.mxu0 %v250
      %319 = vmatprep.subr.mxu0 0.0
      %320 = vmatpush2.msra.mxu0 0.0
      %321 = vmatprep.subr.mxu0 0.0
      %322 = vmatpush2.msra.mxu0 0.0
      %323 = vmatprep.subr.mxu0 0.0
      %324 = vmatpush2.msra.mxu0 0.0
      %325 = vmatprep.subr.mxu0 0.0
      %326 = vmatpush2.msra.mxu0 0.0
      %327 = vmatprep.subr.mxu0 0.0
      %328 = vmatpush2.msra.mxu0 0.0
      %329 = vmatprep.subr.mxu0 0.0
      %330 = vmatpush2.msra.mxu0 0.0
      %331 = vmatprep.subr.mxu0 0.0
      %332 = vmatpush2.msra.mxu0 0.0
      %333 = vmatprep.subr.mxu0 0.0
      %334 = vmatpush2.msra.mxu0 0.0
      %335 = vmatprep.subr.mxu0 0.0
      %336 = vmatpush2.msra.mxu0 0.0
      %337 = vmatprep.subr.mxu0 0.0
      %338 = vmatpush2.msra.mxu0 0.0
      %339 = vmatprep.subr.mxu0 0.0
      %340 = vmatpush2.msra.mxu0 0.0
      %341 = vmatprep.subr.mxu0 0.0
      %342 = vmatpush2.msra.mxu0 0.0
      %343 = vmatprep.subr.mxu0 0.0
      %344 = vmatpush2.msra.mxu0 0.0
      %345 = vmatprep.subr.mxu0 0.0
      %346 = vmatpush2.msra.mxu0 0.0
      %347 = vmatprep.subr.mxu0 0.0
      %348 = vmatpush2.msra.mxu0 0.0
      %349 = vmatprep.subr.mxu0 0.0
      %350 = vmatpush2.msra.mxu0 0.0
      %351 = vmatprep.mubr.f32.mxu0 0.0
      %352 = vmatmul.mubr.f32.gmra.mxu0 %v264
      %v353 = vpop.f32.mrf.mxu0
      %v354 = vadd.f32 %v254, %v353
      %v355 = vpop.f32.mrf.mxu0
      %356 = vmatprep.mubr.f32.mxu0 0.0
      %357 = vmatmul.mubr.f32.gmra.mxu0 %v267
      %v358 = vpop.f32.mrf.mxu0
      %v359 = vadd.f32 %v255, %v358
      %v360 = vpop.f32.mrf.mxu0
      %361 = vmatprep.mubr.f32.mxu0 0.0
      %362 = vmatmul.mubr.f32.gmra.mxu0 %v270
      %v363 = vpop.f32.mrf.mxu0
      %v364 = vadd.f32 %v256, %v363
      %v365 = vpop.f32.mrf.mxu0
      %366 = vmatprep.mubr.f32.mxu0 0.0
      %367 = vmatmul.mubr.f32.gmra.mxu0 %v273
      %v368 = vpop.f32.mrf.mxu0
      %v369 = vadd.f32 %v257, %v368
      %v370 = vpop.f32.mrf.mxu0
      %371 = vmatprep.mubr.f32.mxu0 0.0
      %372 = vmatmul.mubr.f32.gmra.mxu0 %v276
      %v373 = vpop.f32.mrf.mxu0
      %v374 = vadd.f32 %v258, %v373
      %v375 = vpop.f32.mrf.mxu0
      %376 = vmatprep.mubr.f32.mxu0 0.0
      %377 = vmatmul.mubr.f32.gmra.mxu0 %v279
      %v378 = vpop.f32.mrf.mxu0
      %v379 = vadd.f32 %v259, %v378
      %v380 = vpop.f32.mrf.mxu0
      %381 = vmatprep.mubr.f32.mxu0 0.0
      %382 = vmatmul.mubr.f32.gmra.mxu0 %v282
      %v383 = vpop.f32.mrf.mxu0
      %v384 = vadd.f32 %v260, %v383
      %v385 = vpop.f32.mrf.mxu0
      %386 = vmatprep.mubr.f32.mxu0 0.0
      %387 = vmatmul.mubr.f32.gmra.mxu0 %v285
      %v388 = vpop.f32.mrf.mxu0
      %v389 = vadd.f32 %v261, %v388
      %v390 = vpop.f32.mrf.mxu0
      %391 = vdwg.mxu0
      %v392 = vmax.f32 %v354, 0.0
      %v393 = vmax.f32 %v359, 0.0
      %v394 = vmax.f32 %v364, 0.0
      %v395 = vmax.f32 %v369, 0.0
      %v396 = vmax.f32 %v374, 0.0
      %v397 = vmax.f32 %v379, 0.0
      %v398 = vmax.f32 %v384, 0.0
      %v399 = vmax.f32 %v389, 0.0
      %v400 = vld [vmem:[%s3] sm:$0x1]
      %vm401 = vcmask 523264
      %v403 = vsel %vm401, %v400, 0
      %405 = vmatprep.subr.mxu0 0.0
      %406 = vmatpush1.msra.mxu0 0.0
      %407 = vmatprep.subr.mxu0 0.0
      %408 = vmatpush1.msra.mxu0 0.0
      %409 = vmatprep.subr.mxu0 0.0
      %410 = vmatpush1.msra.mxu0 0.0
      %411 = vmatprep.subr.mxu0 0.0
      %412 = vmatpush1.msra.mxu0 0.0
      %413 = vmatprep.subr.mxu0 0.0
      %414 = vmatpush1.msra.mxu0 0.0
      %415 = vmatprep.subr.mxu0 0.0
      %416 = vmatpush1.msra.mxu0 0.0
      %417 = vmatprep.subr.mxu0 0.0
      %418 = vmatpush1.msra.mxu0 0.0
      %419 = vmatprep.subr.mxu0 0.0
      %420 = vmatpush1.msra.mxu0 0.0
      %421 = vmatprep.subr.mxu0 0.0
      %422 = vmatpush1.msra.mxu0 %v399
      %423 = vmatprep.subr.mxu0 0.0
      %424 = vmatpush1.msra.mxu0 %v398
      %425 = vmatprep.subr.mxu0 0.0
      %426 = vmatpush1.msra.mxu0 %v397
      %427 = vmatprep.subr.mxu0 0.0
      %428 = vmatpush1.msra.mxu0 %v396
      %429 = vmatprep.subr.mxu0 0.0
      %430 = vmatpush1.msra.mxu0 %v395
      %431 = vmatprep.subr.mxu0 0.0
      %432 = vmatpush1.msra.mxu0 %v394
      %433 = vmatprep.subr.mxu0 0.0
      %434 = vmatpush1.msra.mxu0 %v393
      %435 = vmatprep.subr.mxu0 0.0
      %436 = vmatpush1.msra.mxu0 %v392
      %437 = vmatprep.subr.mxu0 0.0
      %438 = vmatpush2.msra.mxu0 0.0
      %439 = vmatprep.subr.mxu0 0.0
      %440 = vmatpush2.msra.mxu0 0.0
      %441 = vmatprep.subr.mxu0 0.0
      %442 = vmatpush2.msra.mxu0 0.0
      %443 = vmatprep.subr.mxu0 0.0
      %444 = vmatpush2.msra.mxu0 0.0
      %445 = vmatprep.subr.mxu0 0.0
      %446 = vmatpush2.msra.mxu0 0.0
      %447 = vmatprep.subr.mxu0 0.0
      %448 = vmatpush2.msra.mxu0 0.0
      %449 = vmatprep.subr.mxu0 0.0
      %450 = vmatpush2.msra.mxu0 0.0
      %451 = vmatprep.subr.mxu0 0.0
      %452 = vmatpush2.msra.mxu0 0.0
      %453 = vmatprep.subr.mxu0 0.0
      %454 = vmatpush2.msra.mxu0 0.0
      %455 = vmatprep.subr.mxu0 0.0
      %456 = vmatpush2.msra.mxu0 0.0
      %457 = vmatprep.subr.mxu0 0.0
      %458 = vmatpush2.msra.mxu0 0.0
      %459 = vmatprep.subr.mxu0 0.0
      %460 = vmatpush2.msra.mxu0 0.0
      %461 = vmatprep.subr.mxu0 0.0
      %462 = vmatpush2.msra.mxu0 0.0
      %463 = vmatprep.subr.mxu0 0.0
      %464 = vmatpush2.msra.mxu0 0.0
      %465 = vmatprep.subr.mxu0 0.0
      %466 = vmatpush2.msra.mxu0 0.0
      %467 = vmatprep.subr.mxu0 0.0
      %468 = vmatpush2.msra.mxu0 0.0
      %469 = vmatprep.mubr.f32.mxu0 0.0
      %470 = vmatmul.mubr.f32.gmra.mxu0 %v403
      %v471 = vpop.f32.mrf.mxu0
      %v472 = vadd.f32 0.0, %v471
      %v473 = vpop.f32.mrf.mxu0
      %474 = vdwg.mxu0
      %475 = vst [vmem:[%s241] sm:$0x1] %v472
      %p476 = scmp.lt.s32.totalorder %s20, 1
      %s477 = scalar_select %p476, %s20, 1
      %p478 = scmp.lt.s32.totalorder %s19, 0
      %s479 = scalar_select %p478, %s19, 0
      %s480 = sadd.s32 %s479, %s477
      %s481 = scalar_lea.vmem %s4, %s480
      // Predicated region
      $region37: #{fwd.1} parent=35 // pred_check
        %p482 = pneg %p143
      $region38: #{fwd.1} parent=35 // pred_check_branch
        %484 = sbr.rel (%p482) target = $region40
      $region39: #{fwd.1} parent=35 // pred_region
        _
      $region40: #{fwd.1} parent=35 // pred_fallthru
        _
    $region36: #{fwd.1} parent=5 // pred_fallthru
      _
    %p485 = scmp.le.s32.totalorder 2, %s10
    // Predicated region
    $region41: #{fwd.1} parent=5 // pred_check
      %p486 = pneg %p485
    $region42: #{fwd.1} parent=5 // pred_check_branch
      %488 = sbr.rel (%p486) target = $region44
    $region43: #{fwd.1} parent=5 // pred_region
      %s489 = ssub.s32 %s10, 2
      // Predicated region
      $region45: #{fwd.1} parent=43 // pred_check
        %p490 = pneg %p149
      $region46: #{fwd.1} parent=43 // pred_check_branch
        %492 = sbr.rel (%p490) target = $region48
      $region47: #{fwd.1} parent=43 // pred_region
        %p493 = scmp.lt.s32.totalorder %s22, 1
        %s494 = scalar_select %p493, %s22, 1
        %p495 = scmp.lt.s32.totalorder %s21, 0
        %s496 = scalar_select %p495, %s21, 0
        %s497 = sadd.s32 %s496, %s494
        %s498 = scalar_lea.vmem %s4, %s497
      $region48: #{fwd.1} parent=43 // pred_fallthru
        _
    $region44: #{fwd.1} parent=5 // pred_fallthru
      _
  $region6: #{fwd.1} parent=0 // loop_footer
    %s14 = sadd.s32 1, %s10
  $region7: #{fwd.1} parent=0 // loop_footer_branch
    %9 = sbr.rel target = $region3
  $region8: #{fwd.1} parent=0 // loop_exit
    _

</llo_original>
